<compile_context>
chip_gen: v5e
topology: v5e:2x2
jax: 0.10.0
libtpu: 0.0.40
codegen_flags: <defaults>
</compile_context>

<pallas_src>
import jax
import jax.numpy as jnp
from jax.experimental import pallas as pl
from jax.experimental.pallas import tpu as pltpu


def _round_up(x, m):
    return ((x + m - 1) // m) * m


def _default_num_chunks():
    """One chunk per TensorCore (2 on v7x, 1 on v5e/v6e); falls back to 1."""
    try:
        info = pltpu.get_tpu_info()
        for attr in ("num_cores", "core_count", "num_tensorcores", "num_tensor_cores"):
            n = getattr(info, attr, None)
            if isinstance(n, int) and n > 0:
                return n
    except Exception:
        pass
    return 1


def soft_dice_kernel(logits_ref, labels_ref, sp_ref, spo_ref, spp_ref, cnt_ref):
    """Accumulate per-class partial sums for one chunk (grid axis 0, parallel)
    over its reduction tiles (grid axis 1, arbitrary).

    Tiles are lane-dense: logits (C, tile_n), labels (1, tile_n).  The four
    resident (1, C, 1) output blocks of a chunk hold
        sum(p), sum(p * onehot), sum(p^2), count(onehot).
    Padded points carry the sentinel label C (onehot == 0) and zero logits
    (p == 1/C); their exact contribution is removed in the host combine.
    """
    t = pl.program_id(1)

    @pl.when(t == 0)
    def _():
        sp_ref[...] = jnp.zeros_like(sp_ref)
        spo_ref[...] = jnp.zeros_like(spo_ref)
        spp_ref[...] = jnp.zeros_like(spp_ref)
        cnt_ref[...] = jnp.zeros_like(cnt_ref)

    x = logits_ref[...].astype(jnp.float32)            # (C, tn), cast in VMEM
    labels = labels_ref[...]                            # (1, tn) int32
    C, tn = x.shape

    # One-hot along the small sublane class axis; the sentinel C never matches.
    class_ids = jax.lax.broadcasted_iota(jnp.int32, (C, tn), 0)
    onehot = (class_ids == labels).astype(jnp.float32)  # (C, tn)

    # Softmax over the class (sublane) axis; reciprocal on the EUP (vrcp) plus
    # one Newton step on the (1, tn) denominator for f32-level accuracy.
    m = jnp.max(x, axis=0, keepdims=True)                # (1, tn)
    e = jnp.exp(x - m)                                   # (C, tn)
    denom = jnp.sum(e, axis=0, keepdims=True)            # (1, tn)
    r = pl.reciprocal(denom, approx=True)
    r = r * (2.0 - denom * r)                            # one Newton step (cheap)
    p = e * r                                            # (C, tn)

    # Per-class lane reductions, accumulated into the resident output blocks.
    sp_ref[...] += jnp.sum(p, axis=-1, keepdims=True).reshape(1, C, 1)
    spo_ref[...] += jnp.sum(p * onehot, axis=-1, keepdims=True).reshape(1, C, 1)
    spp_ref[...] += jnp.sum(p * p, axis=-1, keepdims=True).reshape(1, C, 1)
    cnt_ref[...] += jnp.sum(onehot, axis=-1, keepdims=True).reshape(1, C, 1)


def soft_dice_loss(logits, labels, *, eps=0.05, tile_n=32768, num_chunks=None):
    """Forward of SoftDICELoss with module defaults (powerize=True,
    use_tmask=True, neg_range=False, ignore_label=None, is_kitti=False).

    logits: (N, C) float (any dtype), labels: (N,) int.
    """
    N, C = logits.shape
    assert C >= 2, "SoftDICELoss needs at least 2 classes (eps / (C - 1))"

    if num_chunks is None:
        num_chunks = _default_num_chunks()

    # Lane-dense layouts: one extra mem-bound transpose pass over the logits is
    # far cheaper than the 4-6x vector-slot cost of an (N, C) kernel layout.
    logits_t = jnp.transpose(logits)                     # (C, N), native dtype
    labels2d = labels.reshape(1, N).astype(jnp.int32)    # (1, N)

    # Large, 128-aligned point tiles; shrink for small inputs.
    tile_n = int(min(int(tile_n), _round_up(pl.cdiv(N, num_chunks), 128)))
    tile_n = max(128, _round_up(tile_n, 128))
    tiles_per_chunk = pl.cdiv(N, num_chunks * tile_n)
    n_pad = num_chunks * tiles_per_chunk * tile_n
    if n_pad != N:
        # zero logits -> p = 1/C; sentinel label C -> onehot = 0 (corrected below)
        logits_t = jnp.pad(logits_t, ((0, 0), (0, n_pad - N)))
        labels2d = jnp.pad(labels2d, ((0, 0), (0, n_pad - N)), constant_values=C)

    col_map = lambda c, t: (0, c * tiles_per_chunk + t)
    out_spec = pl.BlockSpec((1, C, 1), lambda c, t: (c, 0, 0))

    parts = pl.pallas_call(
        soft_dice_kernel,
        out_shape=tuple(jax.ShapeDtypeStruct((num_chunks, C, 1), jnp.float32)
                        for _ in range(4)),
        grid_spec=pltpu.PrefetchScalarGridSpec(
            num_scalar_prefetch=0,
            grid=(num_chunks, tiles_per_chunk),
            in_specs=[
                pl.BlockSpec((C, tile_n), col_map),      # logits (native dtype)
                pl.BlockSpec((1, tile_n), col_map),      # labels (int32)
            ],
            out_specs=(out_spec, out_spec, out_spec, out_spec),
        ),
        compiler_params=pltpu.CompilerParams(
            dimension_semantics=("parallel", "arbitrary"),
            vmem_limit_bytes=48 * 1024 * 1024,  # fits v7x 64 MiB; fine on v5e/v6e
        ),
    )(logits_t, labels2d)

    # Tiny combine in plain JAX (O(num_chunks * 4 * C)).
    sum_p, sum_po, sum_pp, cnt = [o.sum(axis=0).reshape((C,)) for o in parts]

    # Remove the exactly-known contribution of the zero-logit padded points.
    n_padded = float(n_pad - N)
    sum_p = sum_p - n_padded / C
    sum_pp = sum_pp - n_padded / (C * C)

    max_val = 1.0 - eps
    min_val = eps / (C - 1)
    # t_soft = min_val + (max_val - min_val) * onehot, reconstructed here:
    inter = min_val * sum_p + (max_val - min_val) * sum_po
    sum_tsoft = min_val * float(N) + (max_val - min_val) * cnt
    union = sum_pp + sum_tsoft + 1e-12                   # powerize=True
    tmask = (cnt > 0).astype(jnp.float32)                # use_tmask=True
    iou = jnp.sum(tmask * 2.0 * inter / union) / (jnp.sum(tmask) + 1e-12)
    return 1.0 - iou                                     # neg_range=False


def soft_dice_loss_ref(logits, labels, *, eps=0.05):
    """Pure-JAX reference mirroring the PyTorch forward."""
    N, C = logits.shape
    onehot = jax.nn.one_hot(labels, C, dtype=jnp.float32)
    t_soft = jnp.where(onehot > 0.5, 1.0 - eps, eps / (C - 1))
    p = jax.nn.softmax(logits.astype(jnp.float32), axis=-1)
    inter = (p * t_soft).sum(axis=0)
    union = (p ** 2).sum(axis=0) + t_soft.sum(axis=0) + 1e-12
    tmask = (onehot.sum(axis=0) > 0).astype(jnp.float32)
    iou = (tmask * 2 * inter / union).sum() / (tmask.sum() + 1e-12)
    return 1.0 - iou


if __name__ == "__main__":
    key = jax.random.PRNGKey(0)
    k1, k2 = jax.random.split(key)
    N, C = 1000, 19                    # non-multiple-of-128 N exercises padding
    logits = jax.random.normal(k1, (N, C), dtype=jnp.float32)
    labels = jax.random.randint(k2, (N,), 0, C, dtype=jnp.int32)

    loss = jax.block_until_ready(soft_dice_loss(logits, labels, eps=0.05))
    ref = jax.block_until_ready(soft_dice_loss_ref(logits, labels, eps=0.05))
    assert jnp.abs(loss - ref) < 1e-4, (loss, ref)
    print("KERNEL_OK")
</pallas_src>

<mosaic_0001>
module attributes {stable_mosaic.version = 11 : i64} {
  func.func @soft_dice_kernel(%arg0: i32, %arg1: i32, %arg2: memref<19x1024xf32, #tpu.memory_space<vmem>>, %arg3: memref<1x1024xi32, #tpu.memory_space<vmem>>, %arg4: memref<1x19x1xf32, #tpu.memory_space<vmem>>, %arg5: memref<1x19x1xf32, #tpu.memory_space<vmem>>, %arg6: memref<1x19x1xf32, #tpu.memory_space<vmem>>, %arg7: memref<1x19x1xf32, #tpu.memory_space<vmem>>) attributes {dimension_semantics = [#tpu.dimension_semantics<parallel>, #tpu.dimension_semantics<arbitrary>], iteration_bounds = array<i64: 1, 1>, scalar_prefetch = 0 : i64, scratch_operands = 0 : i64, tpu.core_type = #tpu.core_type<tc>, window_params = [{transform_indices = @transform_0, window_bounds = array<i64: 19, 1024>}, {transform_indices = @transform_1, window_bounds = array<i64: 1, 1024>}, {transform_indices = @transform_2, window_bounds = array<i64: 1, 19, 1>}, {transform_indices = @transform_3, window_bounds = array<i64: 1, 19, 1>}, {transform_indices = @transform_4, window_bounds = array<i64: 1, 19, 1>}, {transform_indices = @transform_5, window_bounds = array<i64: 1, 19, 1>}]} {
    %c0_i32 = arith.constant 0 : i32
    %0 = arith.cmpi eq, %arg1, %c0_i32 : i32
    %1 = arith.extui %0 : i1 to i32
    %c0_i32_0 = arith.constant 0 : i32
    %2 = arith.cmpi ne, %1, %c0_i32_0 : i32
    scf.if %2 {
      %cst_34 = arith.constant 0.000000e+00 : f32
      %50 = vector.broadcast %cst_34 : f32 to vector<1x19x1xf32>
      %c0_35 = arith.constant 0 : index
      %c0_36 = arith.constant 0 : index
      %c0_37 = arith.constant 0 : index
      %51 = vector.load %arg4[%c0_35, %c0_36, %c0_37] : memref<1x19x1xf32, #tpu.memory_space<vmem>>, vector<1x19x1xf32>
      tpu.vector_store %arg4[%c0_35, %c0_36, %c0_37], %50 {strides = array<i32>} : memref<1x19x1xf32, #tpu.memory_space<vmem>>, vector<1x19x1xf32>,
      %cst_38 = arith.constant 0.000000e+00 : f32
      %52 = vector.broadcast %cst_38 : f32 to vector<1x19x1xf32>
      %c0_39 = arith.constant 0 : index
      %c0_40 = arith.constant 0 : index
      %c0_41 = arith.constant 0 : index
      %53 = vector.load %arg5[%c0_39, %c0_40, %c0_41] : memref<1x19x1xf32, #tpu.memory_space<vmem>>, vector<1x19x1xf32>
      tpu.vector_store %arg5[%c0_39, %c0_40, %c0_41], %52 {strides = array<i32>} : memref<1x19x1xf32, #tpu.memory_space<vmem>>, vector<1x19x1xf32>,
      %cst_42 = arith.constant 0.000000e+00 : f32
      %54 = vector.broadcast %cst_42 : f32 to vector<1x19x1xf32>
      %c0_43 = arith.constant 0 : index
      %c0_44 = arith.constant 0 : index
      %c0_45 = arith.constant 0 : index
      %55 = vector.load %arg6[%c0_43, %c0_44, %c0_45] : memref<1x19x1xf32, #tpu.memory_space<vmem>>, vector<1x19x1xf32>
      tpu.vector_store %arg6[%c0_43, %c0_44, %c0_45], %54 {strides = array<i32>} : memref<1x19x1xf32, #tpu.memory_space<vmem>>, vector<1x19x1xf32>,
      %cst_46 = arith.constant 0.000000e+00 : f32
      %56 = vector.broadcast %cst_46 : f32 to vector<1x19x1xf32>
      %c0_47 = arith.constant 0 : index
      %c0_48 = arith.constant 0 : index
      %c0_49 = arith.constant 0 : index
      %57 = vector.load %arg7[%c0_47, %c0_48, %c0_49] : memref<1x19x1xf32, #tpu.memory_space<vmem>>, vector<1x19x1xf32>
      tpu.vector_store %arg7[%c0_47, %c0_48, %c0_49], %56 {strides = array<i32>} : memref<1x19x1xf32, #tpu.memory_space<vmem>>, vector<1x19x1xf32>,
    } else {
    }
    %c0 = arith.constant 0 : index
    %c0_1 = arith.constant 0 : index
    %3 = vector.load %arg2[%c0, %c0_1] : memref<19x1024xf32, #tpu.memory_space<vmem>>, vector<19x1024xf32>
    %c0_2 = arith.constant 0 : index
    %c0_3 = arith.constant 0 : index
    %4 = vector.load %arg3[%c0_2, %c0_3] : memref<1x1024xi32, #tpu.memory_space<vmem>>, vector<1x1024xi32>
    %5 = tpu.iota {dimensions = array<i32: 0>} : vector<19x1024xi32>
    %6 = vector.broadcast %4 : vector<1x1024xi32> to vector<19x1024xi32>
    %7 = arith.cmpi eq, %5, %6 : vector<19x1024xi32>
    %8 = arith.extui %7 : vector<19x1024xi1> to vector<19x1024xi32>
    %9 = arith.sitofp %8 : vector<19x1024xi32> to vector<19x1024xf32>
    %cst = arith.constant dense<0xFF800000> : vector<1024xf32>
    %10 = vector.multi_reduction <maximumf>, %3, %cst [0] : vector<19x1024xf32> to vector<1024xf32>
    %11 = vector.shape_cast %10 : vector<1024xf32> to vector<1x1024xf32>
    %12 = vector.broadcast %11 : vector<1x1024xf32> to vector<19x1024xf32>
    %13 = arith.subf %3, %12 : vector<19x1024xf32>
    %14 = math.exp %13 : vector<19x1024xf32>
    %cst_4 = arith.constant dense<0.000000e+00> : vector<1024xf32>
    %15 = vector.multi_reduction <add>, %14, %cst_4 [0] : vector<19x1024xf32> to vector<1024xf32>
    %16 = vector.shape_cast %15 : vector<1024xf32> to vector<1x1024xf32>
    %17 = tpu.reciprocal %16 {approx = true} : vector<1x1024xf32> -> vector<1x1024xf32>
    %18 = arith.mulf %16, %17 : vector<1x1024xf32>
    %cst_5 = arith.constant 2.000000e+00 : f32
    %19 = vector.broadcast %cst_5 : f32 to vector<1x1024xf32>
    %20 = arith.subf %19, %18 : vector<1x1024xf32>
    %21 = arith.mulf %17, %20 : vector<1x1024xf32>
    %22 = vector.broadcast %21 : vector<1x1024xf32> to vector<19x1024xf32>
    %23 = arith.mulf %14, %22 : vector<19x1024xf32>
    %c0_6 = arith.constant 0 : index
    %c0_7 = arith.constant 0 : index
    %c0_8 = arith.constant 0 : index
    %24 = vector.load %arg4[%c0_6, %c0_7, %c0_8] : memref<1x19x1xf32, #tpu.memory_space<vmem>>, vector<1x19x1xf32>
    %cst_9 = arith.constant dense<0.000000e+00> : vector<19xf32>
    %25 = vector.multi_reduction <add>, %23, %cst_9 [1] : vector<19x1024xf32> to vector<19xf32>
    %26 = vector.shape_cast %25 : vector<19xf32> to vector<19x1xf32>
    %27 = vector.shape_cast %26 : vector<19x1xf32> to vector<1x19x1xf32>
    %28 = arith.addf %24, %27 : vector<1x19x1xf32>
    %c0_10 = arith.constant 0 : index
    %c0_11 = arith.constant 0 : index
    %c0_12 = arith.constant 0 : index
    %29 = vector.load %arg4[%c0_10, %c0_11, %c0_12] : memref<1x19x1xf32, #tpu.memory_space<vmem>>, vector<1x19x1xf32>
    tpu.vector_store %arg4[%c0_10, %c0_11, %c0_12], %28 {strides = array<i32>} : memref<1x19x1xf32, #tpu.memory_space<vmem>>, vector<1x19x1xf32>,
    %c0_13 = arith.constant 0 : index
    %c0_14 = arith.constant 0 : index
    %c0_15 = arith.constant 0 : index
    %30 = vector.load %arg5[%c0_13, %c0_14, %c0_15] : memref<1x19x1xf32, #tpu.memory_space<vmem>>, vector<1x19x1xf32>
    %31 = arith.mulf %23, %9 : vector<19x1024xf32>
    %cst_16 = arith.constant dense<0.000000e+00> : vector<19xf32>
    %32 = vector.multi_reduction <add>, %31, %cst_16 [1] : vector<19x1024xf32> to vector<19xf32>
    %33 = vector.shape_cast %32 : vector<19xf32> to vector<19x1xf32>
    %34 = vector.shape_cast %33 : vector<19x1xf32> to vector<1x19x1xf32>
    %35 = arith.addf %30, %34 : vector<1x19x1xf32>
    %c0_17 = arith.constant 0 : index
    %c0_18 = arith.constant 0 : index
    %c0_19 = arith.constant 0 : index
    %36 = vector.load %arg5[%c0_17, %c0_18, %c0_19] : memref<1x19x1xf32, #tpu.memory_space<vmem>>, vector<1x19x1xf32>
    tpu.vector_store %arg5[%c0_17, %c0_18, %c0_19], %35 {strides = array<i32>} : memref<1x19x1xf32, #tpu.memory_space<vmem>>, vector<1x19x1xf32>,
    %c0_20 = arith.constant 0 : index
    %c0_21 = arith.constant 0 : index
    %c0_22 = arith.constant 0 : index
    %37 = vector.load %arg6[%c0_20, %c0_21, %c0_22] : memref<1x19x1xf32, #tpu.memory_space<vmem>>, vector<1x19x1xf32>
    %38 = arith.mulf %23, %23 : vector<19x1024xf32>
    %cst_23 = arith.constant dense<0.000000e+00> : vector<19xf32>
    %39 = vector.multi_reduction <add>, %38, %cst_23 [1] : vector<19x1024xf32> to vector<19xf32>
    %40 = vector.shape_cast %39 : vector<19xf32> to vector<19x1xf32>
    %41 = vector.shape_cast %40 : vector<19x1xf32> to vector<1x19x1xf32>
    %42 = arith.addf %37, %41 : vector<1x19x1xf32>
    %c0_24 = arith.constant 0 : index
    %c0_25 = arith.constant 0 : index
    %c0_26 = arith.constant 0 : index
    %43 = vector.load %arg6[%c0_24, %c0_25, %c0_26] : memref<1x19x1xf32, #tpu.memory_space<vmem>>, vector<1x19x1xf32>
    tpu.vector_store %arg6[%c0_24, %c0_25, %c0_26], %42 {strides = array<i32>} : memref<1x19x1xf32, #tpu.memory_space<vmem>>, vector<1x19x1xf32>,
    %c0_27 = arith.constant 0 : index
    %c0_28 = arith.constant 0 : index
    %c0_29 = arith.constant 0 : index
    %44 = vector.load %arg7[%c0_27, %c0_28, %c0_29] : memref<1x19x1xf32, #tpu.memory_space<vmem>>, vector<1x19x1xf32>
    %cst_30 = arith.constant dense<0.000000e+00> : vector<19xf32>
    %45 = vector.multi_reduction <add>, %9, %cst_30 [1] : vector<19x1024xf32> to vector<19xf32>
    %46 = vector.shape_cast %45 : vector<19xf32> to vector<19x1xf32>
    %47 = vector.shape_cast %46 : vector<19x1xf32> to vector<1x19x1xf32>
    %48 = arith.addf %44, %47 : vector<1x19x1xf32>
    %c0_31 = arith.constant 0 : index
    %c0_32 = arith.constant 0 : index
    %c0_33 = arith.constant 0 : index
    %49 = vector.load %arg7[%c0_31, %c0_32, %c0_33] : memref<1x19x1xf32, #tpu.memory_space<vmem>>, vector<1x19x1xf32>
    tpu.vector_store %arg7[%c0_31, %c0_32, %c0_33], %48 {strides = array<i32>} : memref<1x19x1xf32, #tpu.memory_space<vmem>>, vector<1x19x1xf32>,
    return
  }
  func.func @transform_0(%arg0: i32, %arg1: i32) -> (i32, i32) {
    %c1_i32 = arith.constant 1 : i32
    %0 = arith.muli %arg0, %c1_i32 : i32
    %1 = arith.addi %0, %arg1 : i32
    %c0_i32 = arith.constant 0 : i32
    %c0_i32_0 = arith.constant 0 : i32
    return %c0_i32, %1 : i32, i32
  }
  func.func @transform_1(%arg0: i32, %arg1: i32) -> (i32, i32) {
    %c1_i32 = arith.constant 1 : i32
    %0 = arith.muli %arg0, %c1_i32 : i32
    %1 = arith.addi %0, %arg1 : i32
    %c0_i32 = arith.constant 0 : i32
    %c0_i32_0 = arith.constant 0 : i32
    return %c0_i32, %1 : i32, i32
  }
  func.func @transform_2(%arg0: i32, %arg1: i32) -> (i32, i32, i32) {
    %c0_i32 = arith.constant 0 : i32
    %c0_i32_0 = arith.constant 0 : i32
    %c0_i32_1 = arith.constant 0 : i32
    return %arg0, %c0_i32, %c0_i32_0 : i32, i32, i32
  }
  func.func @transform_3(%arg0: i32, %arg1: i32) -> (i32, i32, i32) {
    %c0_i32 = arith.constant 0 : i32
    %c0_i32_0 = arith.constant 0 : i32
    %c0_i32_1 = arith.constant 0 : i32
    return %arg0, %c0_i32, %c0_i32_0 : i32, i32, i32
  }
  func.func @transform_4(%arg0: i32, %arg1: i32) -> (i32, i32, i32) {
    %c0_i32 = arith.constant 0 : i32
    %c0_i32_0 = arith.constant 0 : i32
    %c0_i32_1 = arith.constant 0 : i32
    return %arg0, %c0_i32, %c0_i32_0 : i32, i32, i32
  }
  func.func @transform_5(%arg0: i32, %arg1: i32) -> (i32, i32, i32) {
    %c0_i32 = arith.constant 0 : i32
    %c0_i32_0 = arith.constant 0 : i32
    %c0_i32_1 = arith.constant 0 : i32
    return %arg0, %c0_i32, %c0_i32_0 : i32, i32, i32
  }
}

</mosaic_0001>

<llo_original>
// kernel: tpu_custom_call.1
$region0: #{tpu_custom_call.1}
  #allocation0 [shape = 'u32[]', space=smem, size = 0x4, offset = 0x4, fixed_abs, tag = 'smem constant byte address 0x4 - core index']
  #allocation1 [shape = 'u32[72,128]{1,0:T(1,128)}', space=vmem, size = 0x9000, scoped, tag = 'internal scratch']
  %s0 = inlined_call_operand.hbm [shape: f32[19,1024], index: 0, kind: input, shape index: {}]
  %s1 = inlined_call_operand.hbm [shape: s32[1,1024], index: 1, kind: input, shape index: {}]
  %s2 = inlined_call_operand.vmem [shape: f32[1,19,1], index: 2, kind: output, shape index: {0}]
  %s3 = inlined_call_operand.vmem [shape: f32[1,19,1], index: 3, kind: output, shape index: {1}]
  %s4 = inlined_call_operand.vmem [shape: f32[1,19,1], index: 4, kind: output, shape index: {2}]
  %s5 = inlined_call_operand.vmem [shape: f32[1,19,1], index: 5, kind: output, shape index: {3}]
  %6 = xla_tuple %s2, %s3, %s4, %s5
  %s7 = sld [smem:[#allocation0]]
  $region54: #{tpu_custom_call.1} parent=0
    _
  %s9 = ssub.s32 1, %s7
  %s10 = scalar_select 0, %s9, %s7
  $region1: #{tpu_custom_call.1} parent=0
    #allocation2 [shape = 'u8[98304]{0}', space=vmem, size = 0x18000, scoped, tag = 'input window, operand 0, single buffered']
    #allocation3 [shape = 's32[1]{0}', space=sflag, size = 0x4, scoped, tag = 'scoped memory for tpu_custom_call.1']
    #allocation4 [shape = 'u8[4096]{0}', space=vmem, size = 0x1000, scoped, tag = 'input window, operand 1, single buffered']
    #allocation5 [shape = 's32[1]{0}', space=sflag, size = 0x4, scoped, tag = 'scoped memory for tpu_custom_call.1']
    %11 = vsyncpa [#allocation3], 0
    %12 = vsyncpa [#allocation5], 0
    // Predicated region
    $region2: #{tpu_custom_call.1} parent=1 // pred_check
      _
    $region3: #{tpu_custom_call.1} parent=1 // pred_check_branch
      %14 = sbr.rel (0) target = $region5
    $region4: #{tpu_custom_call.1} parent=1 // pred_region
      %s15 = sadd.s32 0, 0
      %s16 = smul.u32 8, %s15
      %18 = vsyncadd [#allocation3], 0
      %s19 = smul.addr %s16, 8
      %s20 = scalar_lea.hbm %s0, %s19
      %s21 = sshll.u32 %s20, 4
      %s22 = int_to_ptr.hbm [resolvable:$true] %s21
      %s23 = sshll.u32 [#allocation2], 4
      %s24 = int_to_ptr.vmem [resolvable:$true] %s23
      %29 = dma.hbm_to_vmem [thread:$0]  %s22, 3072, %s24, [#allocation3], 1024, 1024, 64
    $region5: #{tpu_custom_call.1} parent=1 // pred_fallthru
      _
    // Predicated region
    $region6: #{tpu_custom_call.1} parent=1 // pred_check
      _
    $region7: #{tpu_custom_call.1} parent=1 // pred_check_branch
      %31 = sbr.rel (0) target = $region9
    $region8: #{tpu_custom_call.1} parent=1 // pred_region
      %s32 = sadd.s32 0, 0
      %s33 = smul.u32 8, %s32
      %35 = vsyncadd [#allocation5], 0
      %s36 = scalar_lea.hbm %s1, %s33
      %s38 = sshll.u32 %s36, 4
      %s39 = int_to_ptr.hbm [resolvable:$true] %s38
      %s40 = sshll.u32 [#allocation4], 4
      %s41 = int_to_ptr.vmem [resolvable:$true] %s40
      %43 = dma.hbm_to_vmem [thread:$0]  %s39, 128, %s41, [#allocation5]
    $region9: #{tpu_custom_call.1} parent=1 // pred_fallthru
      _
    // Predicated region
    $region10: #{tpu_custom_call.1} parent=1 // pred_check
      _
    $region11: #{tpu_custom_call.1} parent=1 // pred_check_branch
      %45 = sbr.rel (0) target = $region13
    $region12: #{tpu_custom_call.1} parent=1 // pred_region
      %47 = dma.done [#allocation3], 3072
    $region13: #{tpu_custom_call.1} parent=1 // pred_fallthru
      _
    // Predicated region
    $region14: #{tpu_custom_call.1} parent=1 // pred_check
      _
    $region15: #{tpu_custom_call.1} parent=1 // pred_check_branch
      %49 = sbr.rel (0) target = $region17
    $region16: #{tpu_custom_call.1} parent=1 // pred_region
      %51 = dma.done [#allocation5], 128
    $region17: #{tpu_custom_call.1} parent=1 // pred_fallthru
      _
    %s52 = sadd.s32 0, 0
    %s53 = smul.u32 8, %s52
    %s54 = sadd.s32 0, 0
    %s55 = smul.u32 8, %s54
    %p56 = scmp.eq.s32.totalorder 0, 0
    // Predicated region
    $region18: #{tpu_custom_call.1} parent=1 // pred_check
      %p57 = pneg %p56
    $region19: #{tpu_custom_call.1} parent=1 // pred_check_branch
      %59 = sbr.rel (%p57) target = $region21
    $region20: #{tpu_custom_call.1} parent=1 // pred_region
      %vm60 = vcmask 7168
      %61 = vst.msk [vmem:[%s2] sm:$0xff] %vm60, 0.0
      %62 = vst.msk [vmem:[%s2 + $0x8] sm:$0xff] %vm60, 0.0
      %vm63 = vcmask 2048
      %64 = vst.msk [vmem:[%s2 + $0x10] sm:$0x7] %vm63, 0.0
      %65 = vst.msk [vmem:[%s3] sm:$0xff] %vm60, 0.0
      %66 = vst.msk [vmem:[%s3 + $0x8] sm:$0xff] %vm60, 0.0
      %67 = vst.msk [vmem:[%s3 + $0x10] sm:$0x7] %vm63, 0.0
      %68 = vst.msk [vmem:[%s4] sm:$0xff] %vm60, 0.0
      %69 = vst.msk [vmem:[%s4 + $0x8] sm:$0xff] %vm60, 0.0
      %70 = vst.msk [vmem:[%s4 + $0x10] sm:$0x7] %vm63, 0.0
      %71 = vst.msk [vmem:[%s5] sm:$0xff] %vm60, 0.0
      %72 = vst.msk [vmem:[%s5 + $0x8] sm:$0xff] %vm60, 0.0
      %73 = vst.msk [vmem:[%s5 + $0x10] sm:$0x7] %vm63, 0.0
    $region21: #{tpu_custom_call.1} parent=1 // pred_fallthru
      _
    %v74 = vld [vmem:[#allocation2] sm:$0xff]
    %v75 = vld [vmem:[#allocation2 + $0x8] sm:$0xff]
    %v76 = vld [vmem:[#allocation2 + $0x10] sm:$0xff]
    %v77 = vld [vmem:[#allocation2 + $0x18] sm:$0xff]
    %v78 = vld [vmem:[#allocation2 + $0x20] sm:$0xff]
    %v79 = vld [vmem:[#allocation2 + $0x28] sm:$0xff]
    %v80 = vld [vmem:[#allocation2 + $0x30] sm:$0xff]
    %v81 = vld [vmem:[#allocation2 + $0x38] sm:$0xff]
    %v82 = vld [vmem:[#allocation2 + $0x40] sm:$0xff]
    %v83 = vld [vmem:[#allocation2 + $0x48] sm:$0xff]
    %v84 = vld [vmem:[#allocation2 + $0x50] sm:$0xff]
    %v85 = vld [vmem:[#allocation2 + $0x58] sm:$0xff]
    %v86 = vld [vmem:[#allocation2 + $0x60] sm:$0xff]
    %v87 = vld [vmem:[#allocation2 + $0x68] sm:$0xff]
    %v88 = vld [vmem:[#allocation2 + $0x70] sm:$0xff]
    %v89 = vld [vmem:[#allocation2 + $0x78] sm:$0xff]
    %v90 = vld [vmem:[#allocation2 + $0x80] sm:$0x7]
    %v91 = vld [vmem:[#allocation2 + $0x88] sm:$0x7]
    %v92 = vld [vmem:[#allocation2 + $0x90] sm:$0x7]
    %v93 = vld [vmem:[#allocation2 + $0x98] sm:$0x7]
    %v94 = vld [vmem:[#allocation2 + $0xa0] sm:$0x7]
    %v95 = vld [vmem:[#allocation2 + $0xa8] sm:$0x7]
    %v96 = vld [vmem:[#allocation2 + $0xb0] sm:$0x7]
    %v97 = vld [vmem:[#allocation2 + $0xb8] sm:$0x7]
    %v98 = vld [vmem:[#allocation4] sm:$0xff]
    %v99 = vlaneseq
    %v100 = vshrl.u32 %v99, 7
    %v101 = vadd.s32 %v100, 8
    %v102 = vadd.s32 %v100, 16
    %v103 = vperm.slane %v98, 0
    %v104 = vperm.slane %v98, 1
    %v105 = vperm.slane %v98, 2
    %v106 = vperm.slane %v98, 3
    %v107 = vperm.slane %v98, 4
    %v108 = vperm.slane %v98, 5
    %v109 = vperm.slane %v98, 6
    %v110 = vperm.slane %v98, 7
    %vm111 = vcmp.eq.s32.totalorder %v100, %v103
    %vm112 = vcmp.eq.s32.totalorder %v100, %v104
    %vm113 = vcmp.eq.s32.totalorder %v100, %v105
    %vm114 = vcmp.eq.s32.totalorder %v100, %v106
    %vm115 = vcmp.eq.s32.totalorder %v100, %v107
    %vm116 = vcmp.eq.s32.totalorder %v100, %v108
    %vm117 = vcmp.eq.s32.totalorder %v100, %v109
    %vm118 = vcmp.eq.s32.totalorder %v100, %v110
    %vm119 = vcmp.eq.s32.totalorder %v101, %v103
    %vm120 = vcmp.eq.s32.totalorder %v101, %v104
    %vm121 = vcmp.eq.s32.totalorder %v101, %v105
    %vm122 = vcmp.eq.s32.totalorder %v101, %v106
    %vm123 = vcmp.eq.s32.totalorder %v101, %v107
    %vm124 = vcmp.eq.s32.totalorder %v101, %v108
    %vm125 = vcmp.eq.s32.totalorder %v101, %v109
    %vm126 = vcmp.eq.s32.totalorder %v101, %v110
    %vm127 = vcmp.eq.s32.totalorder %v102, %v103
    %vm128 = vcmp.eq.s32.totalorder %v102, %v104
    %vm129 = vcmp.eq.s32.totalorder %v102, %v105
    %vm130 = vcmp.eq.s32.totalorder %v102, %v106
    %vm131 = vcmp.eq.s32.totalorder %v102, %v107
    %vm132 = vcmp.eq.s32.totalorder %v102, %v108
    %vm133 = vcmp.eq.s32.totalorder %v102, %v109
    %vm134 = vcmp.eq.s32.totalorder %v102, %v110
    %v135 = vsel %vm111, 1, 0
    %v136 = vsel %vm112, 1, 0
    %v137 = vsel %vm113, 1, 0
    %v138 = vsel %vm114, 1, 0
    %v139 = vsel %vm115, 1, 0
    %v140 = vsel %vm116, 1, 0
    %v141 = vsel %vm117, 1, 0
    %v142 = vsel %vm118, 1, 0
    %v143 = vsel %vm119, 1, 0
    %v144 = vsel %vm120, 1, 0
    %v145 = vsel %vm121, 1, 0
    %v146 = vsel %vm122, 1, 0
    %v147 = vsel %vm123, 1, 0
    %v148 = vsel %vm124, 1, 0
    %v149 = vsel %vm125, 1, 0
    %v150 = vsel %vm126, 1, 0
    %v151 = vsel %vm127, 1, 0
    %v152 = vsel %vm128, 1, 0
    %v153 = vsel %vm129, 1, 0
    %v154 = vsel %vm130, 1, 0
    %v155 = vsel %vm131, 1, 0
    %v156 = vsel %vm132, 1, 0
    %v157 = vsel %vm133, 1, 0
    %v158 = vsel %vm134, 1, 0
    %v159 = vcvt.s32.f32 %v135
    %v160 = vcvt.s32.f32 %v136
    %v161 = vcvt.s32.f32 %v137
    %v162 = vcvt.s32.f32 %v138
    %v163 = vcvt.s32.f32 %v139
    %v164 = vcvt.s32.f32 %v140
    %v165 = vcvt.s32.f32 %v141
    %v166 = vcvt.s32.f32 %v142
    %v167 = vcvt.s32.f32 %v143
    %v168 = vcvt.s32.f32 %v144
    %v169 = vcvt.s32.f32 %v145
    %v170 = vcvt.s32.f32 %v146
    %v171 = vcvt.s32.f32 %v147
    %v172 = vcvt.s32.f32 %v148
    %v173 = vcvt.s32.f32 %v149
    %v174 = vcvt.s32.f32 %v150
    %v175 = vcvt.s32.f32 %v151
    %v176 = vcvt.s32.f32 %v152
    %v177 = vcvt.s32.f32 %v153
    %v178 = vcvt.s32.f32 %v154
    %v179 = vcvt.s32.f32 %v155
    %v180 = vcvt.s32.f32 %v156
    %v181 = vcvt.s32.f32 %v157
    %v182 = vcvt.s32.f32 %v158
    %v183 = vmax.f32 %v74, %v82
    %vm184 = vcmask 1042432
    %v185 = vsel %vm184, %v90, -inf
    %v186 = vmax.f32 %v183, %v185
    %v187 = vrot.slane %v186, 4
    %v188 = vmax.f32 %v186, %v187
    %v189 = vrot.slane %v188, 2
    %v190 = vmax.f32 %v188, %v189
    %v191 = vrot.slane %v190, 1
    %v192 = vmax.f32 %v190, %v191
    %v193 = vmax.f32 %v75, %v83
    %v194 = vsel %vm184, %v91, -inf
    %v195 = vmax.f32 %v193, %v194
    %v196 = vrot.slane %v195, 4
    %v197 = vmax.f32 %v195, %v196
    %v198 = vrot.slane %v197, 2
    %v199 = vmax.f32 %v197, %v198
    %v200 = vrot.slane %v199, 1
    %v201 = vmax.f32 %v199, %v200
    %v202 = vmax.f32 %v76, %v84
    %v203 = vsel %vm184, %v92, -inf
    %v204 = vmax.f32 %v202, %v203
    %v205 = vrot.slane %v204, 4
    %v206 = vmax.f32 %v204, %v205
    %v207 = vrot.slane %v206, 2
    %v208 = vmax.f32 %v206, %v207
    %v209 = vrot.slane %v208, 1
    %v210 = vmax.f32 %v208, %v209
    %v211 = vmax.f32 %v77, %v85
    %v212 = vsel %vm184, %v93, -inf
    %v213 = vmax.f32 %v211, %v212
    %v214 = vrot.slane %v213, 4
    %v215 = vmax.f32 %v213, %v214
    %v216 = vrot.slane %v215, 2
    %v217 = vmax.f32 %v215, %v216
    %v218 = vrot.slane %v217, 1
    %v219 = vmax.f32 %v217, %v218
    %v220 = vmax.f32 %v78, %v86
    %v221 = vsel %vm184, %v94, -inf
    %v222 = vmax.f32 %v220, %v221
    %v223 = vrot.slane %v222, 4
    %v224 = vmax.f32 %v222, %v223
    %v225 = vrot.slane %v224, 2
    %v226 = vmax.f32 %v224, %v225
    %v227 = vrot.slane %v226, 1
    %v228 = vmax.f32 %v226, %v227
    %v229 = vmax.f32 %v79, %v87
    %v230 = vsel %vm184, %v95, -inf
    %v231 = vmax.f32 %v229, %v230
    %v232 = vrot.slane %v231, 4
    %v233 = vmax.f32 %v231, %v232
    %v234 = vrot.slane %v233, 2
    %v235 = vmax.f32 %v233, %v234
    %v236 = vrot.slane %v235, 1
    %v237 = vmax.f32 %v235, %v236
    %v238 = vmax.f32 %v80, %v88
    %v239 = vsel %vm184, %v96, -inf
    %v240 = vmax.f32 %v238, %v239
    %v241 = vrot.slane %v240, 4
    %v242 = vmax.f32 %v240, %v241
    %v243 = vrot.slane %v242, 2
    %v244 = vmax.f32 %v242, %v243
    %v245 = vrot.slane %v244, 1
    %v246 = vmax.f32 %v244, %v245
    %v247 = vmax.f32 %v81, %v89
    %v248 = vsel %vm184, %v97, -inf
    %v249 = vmax.f32 %v247, %v248
    %v250 = vrot.slane %v249, 4
    %v251 = vmax.f32 %v249, %v250
    %v252 = vrot.slane %v251, 2
    %v253 = vmax.f32 %v251, %v252
    %v254 = vrot.slane %v253, 1
    %v255 = vmax.f32 %v253, %v254
    %v256 = vsub.f32 %v74, %v192
    %v257 = vsub.f32 %v75, %v201
    %v258 = vsub.f32 %v76, %v210
    %v259 = vsub.f32 %v77, %v219
    %v260 = vsub.f32 %v78, %v228
    %v261 = vsub.f32 %v79, %v237
    %v262 = vsub.f32 %v80, %v246
    %v263 = vsub.f32 %v81, %v255
    %v264 = vsub.f32 %v82, %v192
    %v265 = vsub.f32 %v83, %v201
    %v266 = vsub.f32 %v84, %v210
    %v267 = vsub.f32 %v85, %v219
    %v268 = vsub.f32 %v86, %v228
    %v269 = vsub.f32 %v87, %v237
    %v270 = vsub.f32 %v88, %v246
    %v271 = vsub.f32 %v89, %v255
    %v272 = vsub.f32 %v90, %v192
    %v273 = vsub.f32 %v91, %v201
    %v274 = vsub.f32 %v92, %v210
    %v275 = vsub.f32 %v93, %v219
    %v276 = vsub.f32 %v94, %v228
    %v277 = vsub.f32 %v95, %v237
    %v278 = vsub.f32 %v96, %v246
    %v279 = vsub.f32 %v97, %v255
    %v280 = vmul.f32 %v256, 1.442695
    %v281 = vpow.pop %v280
    %v282 = vmul.f32 %v257, 1.442695
    %v283 = vpow.pop %v282
    %v284 = vmul.f32 %v258, 1.442695
    %v285 = vpow.pop %v284
    %v286 = vmul.f32 %v259, 1.442695
    %v287 = vpow.pop %v286
    %v288 = vmul.f32 %v260, 1.442695
    %v289 = vpow.pop %v288
    %v290 = vmul.f32 %v261, 1.442695
    %v291 = vpow.pop %v290
    %v292 = vmul.f32 %v262, 1.442695
    %v293 = vpow.pop %v292
    %v294 = vmul.f32 %v263, 1.442695
    %v295 = vpow.pop %v294
    %v296 = vmul.f32 %v264, 1.442695
    %v297 = vpow.pop %v296
    %v298 = vmul.f32 %v265, 1.442695
    %v299 = vpow.pop %v298
    %v300 = vmul.f32 %v266, 1.442695
    %v301 = vpow.pop %v300
    %v302 = vmul.f32 %v267, 1.442695
    %v303 = vpow.pop %v302
    %v304 = vmul.f32 %v268, 1.442695
    %v305 = vpow.pop %v304
    %v306 = vmul.f32 %v269, 1.442695
    %v307 = vpow.pop %v306
    %v308 = vmul.f32 %v270, 1.442695
    %v309 = vpow.pop %v308
    %v310 = vmul.f32 %v271, 1.442695
    %v311 = vpow.pop %v310
    %v312 = vmul.f32 %v272, 1.442695
    %v313 = vpow.pop %v312
    %v314 = vmul.f32 %v273, 1.442695
    %v315 = vpow.pop %v314
    %v316 = vmul.f32 %v274, 1.442695
    %v317 = vpow.pop %v316
    %v318 = vmul.f32 %v275, 1.442695
    %v319 = vpow.pop %v318
    %v320 = vmul.f32 %v276, 1.442695
    %v321 = vpow.pop %v320
    %v322 = vmul.f32 %v277, 1.442695
    %v323 = vpow.pop %v322
    %v324 = vmul.f32 %v278, 1.442695
    %v325 = vpow.pop %v324
    %v326 = vmul.f32 %v279, 1.442695
    %v327 = vpow.pop %v326
    %v328 = vadd.f32 %v281, %v297
    %v329 = vsel %vm184, %v313, 0.0
    %v330 = vadd.f32 %v328, %v329
    %v331 = vrot.slane %v330, 4
    %v332 = vadd.f32 %v330, %v331
    %v333 = vrot.slane %v332, 2
    %v334 = vadd.f32 %v332, %v333
    %v335 = vrot.slane %v334, 1
    %v336 = vadd.f32 %v334, %v335
    %v337 = vadd.f32 %v283, %v299
    %v338 = vsel %vm184, %v315, 0.0
    %v339 = vadd.f32 %v337, %v338
    %v340 = vrot.slane %v339, 4
    %v341 = vadd.f32 %v339, %v340
    %v342 = vrot.slane %v341, 2
    %v343 = vadd.f32 %v341, %v342
    %v344 = vrot.slane %v343, 1
    %v345 = vadd.f32 %v343, %v344
    %v346 = vadd.f32 %v285, %v301
    %v347 = vsel %vm184, %v317, 0.0
    %v348 = vadd.f32 %v346, %v347
    %v349 = vrot.slane %v348, 4
    %v350 = vadd.f32 %v348, %v349
    %v351 = vrot.slane %v350, 2
    %v352 = vadd.f32 %v350, %v351
    %v353 = vrot.slane %v352, 1
    %v354 = vadd.f32 %v352, %v353
    %v355 = vadd.f32 %v287, %v303
    %v356 = vsel %vm184, %v319, 0.0
    %v357 = vadd.f32 %v355, %v356
    %v358 = vrot.slane %v357, 4
    %v359 = vadd.f32 %v357, %v358
    %v360 = vrot.slane %v359, 2
    %v361 = vadd.f32 %v359, %v360
    %v362 = vrot.slane %v361, 1
    %v363 = vadd.f32 %v361, %v362
    %v364 = vadd.f32 %v289, %v305
    %v365 = vsel %vm184, %v321, 0.0
    %v366 = vadd.f32 %v364, %v365
    %v367 = vrot.slane %v366, 4
    %v368 = vadd.f32 %v366, %v367
    %v369 = vrot.slane %v368, 2
    %v370 = vadd.f32 %v368, %v369
    %v371 = vrot.slane %v370, 1
    %v372 = vadd.f32 %v370, %v371
    %v373 = vadd.f32 %v291, %v307
    %v374 = vsel %vm184, %v323, 0.0
    %v375 = vadd.f32 %v373, %v374
    %v376 = vrot.slane %v375, 4
    %v377 = vadd.f32 %v375, %v376
    %v378 = vrot.slane %v377, 2
    %v379 = vadd.f32 %v377, %v378
    %v380 = vrot.slane %v379, 1
    %v381 = vadd.f32 %v379, %v380
    %v382 = vadd.f32 %v293, %v309
    %v383 = vsel %vm184, %v325, 0.0
    %v384 = vadd.f32 %v382, %v383
    %v385 = vrot.slane %v384, 4
    %v386 = vadd.f32 %v384, %v385
    %v387 = vrot.slane %v386, 2
    %v388 = vadd.f32 %v386, %v387
    %v389 = vrot.slane %v388, 1
    %v390 = vadd.f32 %v388, %v389
    %v391 = vadd.f32 %v295, %v311
    %v392 = vsel %vm184, %v327, 0.0
    %v393 = vadd.f32 %v391, %v392
    %v394 = vrot.slane %v393, 4
    %v395 = vadd.f32 %v393, %v394
    %v396 = vrot.slane %v395, 2
    %v397 = vadd.f32 %v395, %v396
    %v398 = vrot.slane %v397, 1
    %v399 = vadd.f32 %v397, %v398
    %v400 = vrcp.pop %v336
    %v401 = vrcp.pop %v345
    %v402 = vrcp.pop %v354
    %v403 = vrcp.pop %v363
    %v404 = vrcp.pop %v372
    %v405 = vrcp.pop %v381
    %v406 = vrcp.pop %v390
    %v407 = vrcp.pop %v399
    %v408 = vmul.f32 %v336, %v400
    %v409 = vmul.f32 %v345, %v401
    %v410 = vmul.f32 %v354, %v402
    %v411 = vmul.f32 %v363, %v403
    %v412 = vmul.f32 %v372, %v404
    %v413 = vmul.f32 %v381, %v405
    %v414 = vmul.f32 %v390, %v406
    %v415 = vmul.f32 %v399, %v407
    %v416 = vsub.f32 2.0, %v408
    %v417 = vsub.f32 2.0, %v409
    %v418 = vsub.f32 2.0, %v410
    %v419 = vsub.f32 2.0, %v411
    %v420 = vsub.f32 2.0, %v412
    %v421 = vsub.f32 2.0, %v413
    %v422 = vsub.f32 2.0, %v414
    %v423 = vsub.f32 2.0, %v415
    %v424 = vmul.f32 %v400, %v416
    %v425 = vmul.f32 %v401, %v417
    %v426 = vmul.f32 %v402, %v418
    %v427 = vmul.f32 %v403, %v419
    %v428 = vmul.f32 %v404, %v420
    %v429 = vmul.f32 %v405, %v421
    %v430 = vmul.f32 %v406, %v422
    %v431 = vmul.f32 %v407, %v423
    %v432 = vmul.f32 %v281, %v424
    %v433 = vmul.f32 %v283, %v425
    %v434 = vmul.f32 %v285, %v426
    %v435 = vmul.f32 %v287, %v427
    %v436 = vmul.f32 %v289, %v428
    %v437 = vmul.f32 %v291, %v429
    %v438 = vmul.f32 %v293, %v430
    %v439 = vmul.f32 %v295, %v431
    %v440 = vmul.f32 %v297, %v424
    %v441 = vmul.f32 %v299, %v425
    %v442 = vmul.f32 %v301, %v426
    %v443 = vmul.f32 %v303, %v427
    %v444 = vmul.f32 %v305, %v428
    %v445 = vmul.f32 %v307, %v429
    %v446 = vmul.f32 %v309, %v430
    %v447 = vmul.f32 %v311, %v431
    %v448 = vmul.f32 %v313, %v424
    %v449 = vmul.f32 %v315, %v425
    %v450 = vmul.f32 %v317, %v426
    %v451 = vmul.f32 %v319, %v427
    %v452 = vmul.f32 %v321, %v428
    %v453 = vmul.f32 %v323, %v429
    %v454 = vmul.f32 %v325, %v430
    %v455 = vmul.f32 %v327, %v431
    %v456 = vld [vmem:[%s2] sm:$0xff]
    %v457 = vld [vmem:[%s2 + $0x8] sm:$0xff]
    %v458 = vld [vmem:[%s2 + $0x10] sm:$0x7]
    %v459 = vadd.f32 %v432, %v433
    %v460 = vadd.f32 %v459, %v434
    %v461 = vadd.f32 %v460, %v435
    %v462 = vadd.f32 %v461, %v436
    %v463 = vadd.f32 %v462, %v437
    %v464 = vadd.f32 %v463, %v438
    %v465 = vadd.f32 %v464, %v439
    %466 = vadd.xlane.f32.xlu0 %v465
    %v467 = vpop.xlane.xlu0 %466
    %v468 = vadd.f32 %v440, %v441
    %v469 = vadd.f32 %v468, %v442
    %v470 = vadd.f32 %v469, %v443
    %v471 = vadd.f32 %v470, %v444
    %v472 = vadd.f32 %v471, %v445
    %v473 = vadd.f32 %v472, %v446
    %v474 = vadd.f32 %v473, %v447
    %475 = vadd.xlane.f32.xlu0 %v474
    %v476 = vpop.xlane.xlu0 %475
    %v477 = vsel %vm184, %v448, 0.0
    %v478 = vsel %vm184, %v449, 0.0
    %v479 = vadd.f32 %v477, %v478
    %v480 = vsel %vm184, %v450, 0.0
    %v481 = vadd.f32 %v479, %v480
    %v482 = vsel %vm184, %v451, 0.0
    %v483 = vadd.f32 %v481, %v482
    %v484 = vsel %vm184, %v452, 0.0
    %v485 = vadd.f32 %v483, %v484
    %v486 = vsel %vm184, %v453, 0.0
    %v487 = vadd.f32 %v485, %v486
    %v488 = vsel %vm184, %v454, 0.0
    %v489 = vadd.f32 %v487, %v488
    %v490 = vsel %vm184, %v455, 0.0
    %v491 = vadd.f32 %v489, %v490
    %492 = vadd.xlane.f32.xlu0 %v491
    %v493 = vpop.xlane.xlu0 %492
    %v494 = vadd.f32 %v456, %v467
    %v495 = vadd.f32 %v457, %v476
    %v496 = vadd.f32 %v458, %v493
    %vm497 = vcmask 7168
    %498 = vst.msk [vmem:[%s2] sm:$0xff] %vm497, %v494
    %499 = vst.msk [vmem:[%s2 + $0x8] sm:$0xff] %vm497, %v495
    %vm500 = vcmask 2048
    %501 = vst.msk [vmem:[%s2 + $0x10] sm:$0x7] %vm500, %v496
    %v502 = vld [vmem:[%s3] sm:$0xff]
    %v503 = vld [vmem:[%s3 + $0x8] sm:$0xff]
    %v504 = vld [vmem:[%s3 + $0x10] sm:$0x7]
    %v505 = vmul.f32 %v432, %v159
    %v506 = vmul.f32 %v433, %v160
    %v507 = vmul.f32 %v434, %v161
    %v508 = vmul.f32 %v435, %v162
    %v509 = vmul.f32 %v436, %v163
    %v510 = vmul.f32 %v437, %v164
    %v511 = vmul.f32 %v438, %v165
    %v512 = vmul.f32 %v439, %v166
    %v513 = vmul.f32 %v440, %v167
    %v514 = vmul.f32 %v441, %v168
    %v515 = vmul.f32 %v442, %v169
    %v516 = vmul.f32 %v443, %v170
    %v517 = vmul.f32 %v444, %v171
    %v518 = vmul.f32 %v445, %v172
    %v519 = vmul.f32 %v446, %v173
    %v520 = vmul.f32 %v447, %v174
    %v521 = vmul.f32 %v448, %v175
    %v522 = vmul.f32 %v449, %v176
    %v523 = vmul.f32 %v450, %v177
    %v524 = vmul.f32 %v451, %v178
    %v525 = vmul.f32 %v452, %v179
    %v526 = vmul.f32 %v453, %v180
    %v527 = vmul.f32 %v454, %v181
    %v528 = vmul.f32 %v455, %v182
    %v529 = vadd.f32 %v505, %v506
    %v530 = vadd.f32 %v529, %v507
    %v531 = vadd.f32 %v530, %v508
    %v532 = vadd.f32 %v531, %v509
    %v533 = vadd.f32 %v532, %v510
    %v534 = vadd.f32 %v533, %v511
    %v535 = vadd.f32 %v534, %v512
    %536 = vadd.xlane.f32.xlu0 %v535
    %v537 = vpop.xlane.xlu0 %536
    %v538 = vadd.f32 %v513, %v514
    %v539 = vadd.f32 %v538, %v515
    %v540 = vadd.f32 %v539, %v516
    %v541 = vadd.f32 %v540, %v517
    %v542 = vadd.f32 %v541, %v518
    %v543 = vadd.f32 %v542, %v519
    %v544 = vadd.f32 %v543, %v520
    %545 = vadd.xlane.f32.xlu0 %v544
    %v546 = vpop.xlane.xlu0 %545
    %v547 = vsel %vm184, %v521, 0.0
    %v548 = vsel %vm184, %v522, 0.0
    %v549 = vadd.f32 %v547, %v548
    %v550 = vsel %vm184, %v523, 0.0
    %v551 = vadd.f32 %v549, %v550
    %v552 = vsel %vm184, %v524, 0.0
    %v553 = vadd.f32 %v551, %v552
    %v554 = vsel %vm184, %v525, 0.0
    %v555 = vadd.f32 %v553, %v554
    %v556 = vsel %vm184, %v526, 0.0
    %v557 = vadd.f32 %v555, %v556
    %v558 = vsel %vm184, %v527, 0.0
    %v559 = vadd.f32 %v557, %v558
    %v560 = vsel %vm184, %v528, 0.0
    %v561 = vadd.f32 %v559, %v560
    %562 = vadd.xlane.f32.xlu0 %v561
    %v563 = vpop.xlane.xlu0 %562
    %v564 = vadd.f32 %v502, %v537
    %v565 = vadd.f32 %v503, %v546
    %v566 = vadd.f32 %v504, %v563
    %567 = vst.msk [vmem:[%s3] sm:$0xff] %vm497, %v564
    %568 = vst.msk [vmem:[%s3 + $0x8] sm:$0xff] %vm497, %v565
    %569 = vst.msk [vmem:[%s3 + $0x10] sm:$0x7] %vm500, %v566
    %v570 = vld [vmem:[%s4] sm:$0xff]
    %v571 = vld [vmem:[%s4 + $0x8] sm:$0xff]
    %v572 = vld [vmem:[%s4 + $0x10] sm:$0x7]
    %v573 = vmul.f32 %v432, %v432
    %v574 = vmul.f32 %v433, %v433
    %v575 = vmul.f32 %v434, %v434
    %v576 = vmul.f32 %v435, %v435
    %v577 = vmul.f32 %v436, %v436
    %v578 = vmul.f32 %v437, %v437
    %v579 = vmul.f32 %v438, %v438
    %v580 = vmul.f32 %v439, %v439
    %v581 = vmul.f32 %v440, %v440
    %v582 = vmul.f32 %v441, %v441
    %v583 = vmul.f32 %v442, %v442
    %v584 = vmul.f32 %v443, %v443
    %v585 = vmul.f32 %v444, %v444
    %v586 = vmul.f32 %v445, %v445
    %v587 = vmul.f32 %v446, %v446
    %v588 = vmul.f32 %v447, %v447
    %v589 = vmul.f32 %v448, %v448
    %v590 = vmul.f32 %v449, %v449
    %v591 = vmul.f32 %v450, %v450
    %v592 = vmul.f32 %v451, %v451
    %v593 = vmul.f32 %v452, %v452
    %v594 = vmul.f32 %v453, %v453
    %v595 = vmul.f32 %v454, %v454
    %v596 = vmul.f32 %v455, %v455
    %v597 = vadd.f32 %v573, %v574
    %v598 = vadd.f32 %v597, %v575
    %v599 = vadd.f32 %v598, %v576
    %v600 = vadd.f32 %v599, %v577
    %v601 = vadd.f32 %v600, %v578
    %v602 = vadd.f32 %v601, %v579
    %v603 = vadd.f32 %v602, %v580
    %604 = vadd.xlane.f32.xlu0 %v603
    %v605 = vpop.xlane.xlu0 %604
    %v606 = vadd.f32 %v581, %v582
    %v607 = vadd.f32 %v606, %v583
    %v608 = vadd.f32 %v607, %v584
    %v609 = vadd.f32 %v608, %v585
    %v610 = vadd.f32 %v609, %v586
    %v611 = vadd.f32 %v610, %v587
    %v612 = vadd.f32 %v611, %v588
    %613 = vadd.xlane.f32.xlu0 %v612
    %v614 = vpop.xlane.xlu0 %613
    %v615 = vsel %vm184, %v589, 0.0
    %v616 = vsel %vm184, %v590, 0.0
    %v617 = vadd.f32 %v615, %v616
    %v618 = vsel %vm184, %v591, 0.0
    %v619 = vadd.f32 %v617, %v618
    %v620 = vsel %vm184, %v592, 0.0
    %v621 = vadd.f32 %v619, %v620
    %v622 = vsel %vm184, %v593, 0.0
    %v623 = vadd.f32 %v621, %v622
    %v624 = vsel %vm184, %v594, 0.0
    %v625 = vadd.f32 %v623, %v624
    %v626 = vsel %vm184, %v595, 0.0
    %v627 = vadd.f32 %v625, %v626
    %v628 = vsel %vm184, %v596, 0.0
    %v629 = vadd.f32 %v627, %v628
    %630 = vadd.xlane.f32.xlu0 %v629
    %v631 = vpop.xlane.xlu0 %630
    %v632 = vadd.f32 %v570, %v605
    %v633 = vadd.f32 %v571, %v614
    %v634 = vadd.f32 %v572, %v631
    %635 = vst.msk [vmem:[%s4] sm:$0xff] %vm497, %v632
    %636 = vst.msk [vmem:[%s4 + $0x8] sm:$0xff] %vm497, %v633
    %637 = vst.msk [vmem:[%s4 + $0x10] sm:$0x7] %vm500, %v634
    %v638 = vld [vmem:[%s5] sm:$0xff]
    %v639 = vld [vmem:[%s5 + $0x8] sm:$0xff]
    %v640 = vld [vmem:[%s5 + $0x10] sm:$0x7]
    %v641 = vadd.f32 %v159, %v160
    %v642 = vadd.f32 %v641, %v161
    %v643 = vadd.f32 %v642, %v162
    %v644 = vadd.f32 %v643, %v163
    %v645 = vadd.f32 %v644, %v164
    %v646 = vadd.f32 %v645, %v165
    %v647 = vadd.f32 %v646, %v166
    %648 = vadd.xlane.f32.xlu0 %v647
    %v649 = vpop.xlane.xlu0 %648
    %v650 = vadd.f32 %v167, %v168
    %v651 = vadd.f32 %v650, %v169
    %v652 = vadd.f32 %v651, %v170
    %v653 = vadd.f32 %v652, %v171
    %v654 = vadd.f32 %v653, %v172
    %v655 = vadd.f32 %v654, %v173
    %v656 = vadd.f32 %v655, %v174
    %657 = vadd.xlane.f32.xlu0 %v656
    %v658 = vpop.xlane.xlu0 %657
    %v659 = vsel %vm184, %v175, 0.0
    %v660 = vsel %vm184, %v176, 0.0
    %v661 = vadd.f32 %v659, %v660
    %v662 = vsel %vm184, %v177, 0.0
    %v663 = vadd.f32 %v661, %v662
    %v664 = vsel %vm184, %v178, 0.0
    %v665 = vadd.f32 %v663, %v664
    %v666 = vsel %vm184, %v179, 0.0
    %v667 = vadd.f32 %v665, %v666
    %v668 = vsel %vm184, %v180, 0.0
    %v669 = vadd.f32 %v667, %v668
    %v670 = vsel %vm184, %v181, 0.0
    %v671 = vadd.f32 %v669, %v670
    %v672 = vsel %vm184, %v182, 0.0
    %v673 = vadd.f32 %v671, %v672
    %674 = vadd.xlane.f32.xlu0 %v673
    %v675 = vpop.xlane.xlu0 %674
    %v676 = vadd.f32 %v638, %v649
    %v677 = vadd.f32 %v639, %v658
    %v678 = vadd.f32 %v640, %v675
    %679 = vst.msk [vmem:[%s5] sm:$0xff] %vm497, %v676
    %680 = vst.msk [vmem:[%s5 + $0x8] sm:$0xff] %vm497, %v677
    %681 = vst.msk [vmem:[%s5 + $0x10] sm:$0x7] %vm500, %v678
    // Predicated region
    $region22: #{tpu_custom_call.1} parent=1 // pred_check
      _
    $region23: #{tpu_custom_call.1} parent=1 // pred_check_branch
      %683 = sbr.rel (0) target = $region25
    $region24: #{tpu_custom_call.1} parent=1 // pred_region
      _
    $region25: #{tpu_custom_call.1} parent=1 // pred_fallthru
      _
    // Predicated region
    $region26: #{tpu_custom_call.1} parent=1 // pred_check
      _
    $region27: #{tpu_custom_call.1} parent=1 // pred_check_branch
      %685 = sbr.rel (0) target = $region29
    $region28: #{tpu_custom_call.1} parent=1 // pred_region
      _
    $region29: #{tpu_custom_call.1} parent=1 // pred_fallthru
      _
    // Predicated region
    $region30: #{tpu_custom_call.1} parent=1 // pred_check
      _
    $region31: #{tpu_custom_call.1} parent=1 // pred_check_branch
      %687 = sbr.rel (0) target = $region33
    $region32: #{tpu_custom_call.1} parent=1 // pred_region
      _
    $region33: #{tpu_custom_call.1} parent=1 // pred_fallthru
      _
    // Predicated region
    $region34: #{tpu_custom_call.1} parent=1 // pred_check
      _
    $region35: #{tpu_custom_call.1} parent=1 // pred_check_branch
      %689 = sbr.rel (0) target = $region37
    $region36: #{tpu_custom_call.1} parent=1 // pred_region
      _
    $region37: #{tpu_custom_call.1} parent=1 // pred_fallthru
      _
    // Predicated region
    $region38: #{tpu_custom_call.1} parent=1 // pred_check
      _
    $region39: #{tpu_custom_call.1} parent=1 // pred_check_branch
      %691 = sbr.rel (0) target = $region41
    $region40: #{tpu_custom_call.1} parent=1 // pred_region
      _
    $region41: #{tpu_custom_call.1} parent=1 // pred_fallthru
      _
    // Predicated region
    $region42: #{tpu_custom_call.1} parent=1 // pred_check
      _
    $region43: #{tpu_custom_call.1} parent=1 // pred_check_branch
      %693 = sbr.rel (0) target = $region45
    $region44: #{tpu_custom_call.1} parent=1 // pred_region
      _
    $region45: #{tpu_custom_call.1} parent=1 // pred_fallthru
      _
    // Predicated region
    $region46: #{tpu_custom_call.1} parent=1 // pred_check
      _
    $region47: #{tpu_custom_call.1} parent=1 // pred_check_branch
      %695 = sbr.rel (0) target = $region49
    $region48: #{tpu_custom_call.1} parent=1 // pred_region
      _
    $region49: #{tpu_custom_call.1} parent=1 // pred_fallthru
      _
    // Predicated region
    $region50: #{tpu_custom_call.1} parent=1 // pred_check
      _
    $region51: #{tpu_custom_call.1} parent=1 // pred_check_branch
      %697 = sbr.rel (0) target = $region53
    $region52: #{tpu_custom_call.1} parent=1 // pred_region
      _
    $region53: #{tpu_custom_call.1} parent=1 // pred_fallthru
      _
    %698 = vsyncpa [#allocation3], 1
    %699 = vsyncpa [#allocation5], 1

</llo_original>
